<compile_context>
chip_gen: v7x
topology: tpu7x:2x2x1
jax: 0.10.0
libtpu: 0.0.40
codegen_flags: <defaults>
</compile_context>

<pallas_src>
import jax
import jax.numpy as jnp
from jax.experimental import pallas as pl
from jax.experimental.pallas import tpu as pltpu

_LANES = 128
_VREG_ELEMS = 8 * _LANES          # 1024 elements per f32 vreg
_ROWS_PER_BLOCK = 2048            # 2048*128*4B = 1 MiB per f32 block (v7x-safe)


def _add_kernel(a_ref, b_ref, o_ref):
    # Whole-tile elementwise add on the VPU.
    o_ref[...] = a_ref[...] + b_ref[...]


def residual_add(x506: jax.Array, x491: jax.Array, *, donate: bool = False) -> jax.Array:
    """x507 = x506 + x491 (elementwise), via a lane-dense Pallas TPU kernel."""
    assert x506.shape == x491.shape and x506.dtype == x491.dtype
    orig_shape = x506.shape
    total = x506.size
    itemsize = jnp.dtype(x506.dtype).itemsize

    # ---- lane-dense 2-D view -------------------------------------------------
    a_flat = x506.reshape(-1)
    b_flat = x491.reshape(-1)
    if total % _LANES == 0:
        padded = total
    else:
        # Pad up to a full vreg multiple: keeps an (rows, 128) lane-dense slab
        # instead of a single-sublane (1, N) row (8x vreg/VMEM waste).
        padded = ((total + _VREG_ELEMS - 1) // _VREG_ELEMS) * _VREG_ELEMS
        pad = padded - total
        a_flat = jnp.pad(a_flat, (0, pad))
        b_flat = jnp.pad(b_flat, (0, pad))

    rows = padded // _LANES
    a2 = a_flat.reshape(rows, _LANES)
    b2 = b_flat.reshape(rows, _LANES)

    cost = pl.CostEstimate(
        flops=total,
        bytes_accessed=3 * total * itemsize,
        transcendentals=0,
    )
    io_aliases = {0: 0} if donate else {}
    out_shape = jax.ShapeDtypeStruct((rows, _LANES), x506.dtype)

    if rows <= _ROWS_PER_BLOCK:
        # Small case (this module's shape): gridless, whole arrays in VMEM.
        out2 = pl.pallas_call(
            _add_kernel,
            out_shape=out_shape,
            in_specs=[
                pl.BlockSpec(memory_space=pltpu.MemorySpace.VMEM),
                pl.BlockSpec(memory_space=pltpu.MemorySpace.VMEM),
            ],
            out_specs=pl.BlockSpec(memory_space=pltpu.MemorySpace.VMEM),
            input_output_aliases=io_aliases,
            cost_estimate=cost,
        )(a2, b2)
    else:
        # Large residual adds: 1-D parallel grid over rows so both v7x
        # TensorCores participate; ~1 MiB blocks stay far under scoped VMEM.
        grid = (pl.cdiv(rows, _ROWS_PER_BLOCK),)
        blk = pl.BlockSpec((_ROWS_PER_BLOCK, _LANES), lambda i: (i, 0))
        out2 = pl.pallas_call(
            _add_kernel,
            out_shape=out_shape,
            grid=grid,
            in_specs=[blk, blk],
            out_specs=blk,
            input_output_aliases=io_aliases,
            cost_estimate=cost,
            compiler_params=pltpu.CompilerParams(
                dimension_semantics=("parallel",),
            ),
        )(a2, b2)

    out_flat = out2.reshape(-1)
    if padded != total:
        out_flat = out_flat[:total]
    return out_flat.reshape(orig_shape)


if __name__ == "__main__":
    key = jax.random.PRNGKey(0)
    k1, k2, k3, k4, k5, k6 = jax.random.split(key, 6)

    # --- primary case: exact module shape [1, 256, 7, 7] ---------------------
    x506 = jax.random.normal(k1, (1, 256, 7, 7), dtype=jnp.float32)
    x491 = jax.random.normal(k2, (1, 256, 7, 7), dtype=jnp.float32)
    out = residual_add(x506, x491)
    jax.block_until_ready(out)
    ref = x506 + x491
    assert out.shape == (1, 256, 7, 7)
    assert out.dtype == jnp.float32
    assert jnp.allclose(out, ref, atol=1e-6, rtol=1e-6)

    # --- fallback path: non-128-divisible size (padded lane-dense slab) ------
    a_odd = jax.random.normal(k3, (1, 3, 5, 7), dtype=jnp.float32)   # 105 elems
    b_odd = jax.random.normal(k4, (1, 3, 5, 7), dtype=jnp.float32)
    out_odd = residual_add(a_odd, b_odd)
    jax.block_until_ready(out_odd)
    assert jnp.allclose(out_odd, a_odd + b_odd, atol=1e-6, rtol=1e-6)

    # --- grid path: larger tensor (template reuse, parallel over rows) -------
    a_big = jax.random.normal(k5, (2, 256, 32, 32), dtype=jnp.float32)  # 4096 rows
    b_big = jax.random.normal(k6, (2, 256, 32, 32), dtype=jnp.float32)
    out_big = residual_add(a_big, b_big)
    jax.block_until_ready(out_big)
    assert jnp.allclose(out_big, a_big + b_big, atol=1e-6, rtol=1e-6)

    print("KERNEL_OK")
</pallas_src>

<mosaic_0001>
module attributes {stable_mosaic.version = 11 : i64} {
  func.func @_add_kernel(%arg0: memref<98x128xf32, #tpu.memory_space<vmem>>, %arg1: memref<98x128xf32, #tpu.memory_space<vmem>>, %arg2: memref<98x128xf32, #tpu.memory_space<vmem>>) attributes {dimension_semantics = [], scalar_prefetch = 0 : i64, scratch_operands = 0 : i64, tpu.core_type = #tpu.core_type<tc>} {
    %c0 = arith.constant 0 : index
    %c0_0 = arith.constant 0 : index
    %0 = vector.load %arg0[%c0, %c0_0] : memref<98x128xf32, #tpu.memory_space<vmem>>, vector<98x128xf32>
    %c0_1 = arith.constant 0 : index
    %c0_2 = arith.constant 0 : index
    %1 = vector.load %arg1[%c0_1, %c0_2] : memref<98x128xf32, #tpu.memory_space<vmem>>, vector<98x128xf32>
    %2 = arith.addf %0, %1 : vector<98x128xf32>
    %c0_3 = arith.constant 0 : index
    %c0_4 = arith.constant 0 : index
    %3 = vector.load %arg2[%c0_3, %c0_4] : memref<98x128xf32, #tpu.memory_space<vmem>>, vector<98x128xf32>
    tpu.vector_store %arg2[%c0_3, %c0_4], %2 {strides = array<i32>} : memref<98x128xf32, #tpu.memory_space<vmem>>, vector<98x128xf32>,
    return
  }
}

</mosaic_0001>

<llo_original>
// kernel: tpu_custom_call.1
$region0: #{tpu_custom_call.1}
  #allocation0 [shape = 'u32[]', space=smem, size = 0x4, offset = 0x4, fixed_abs, tag = 'smem constant byte address 0x4 - core index']
  #allocation1 [shape = 'u32[144,128]{1,0:T(1,128)}', space=vmem, size = 0x12000, scoped, tag = 'internal scratch']
  %s0 = inlined_call_operand.hbm [shape: f32[98,128], index: 0, kind: input, shape index: {}]
  %s1 = inlined_call_operand.hbm [shape: f32[98,128], index: 1, kind: input, shape index: {}]
  %s2 = inlined_call_operand.hbm [shape: f32[98,128], index: 2, kind: output, shape index: {}]
  %s3 = sld [smem:[#allocation0]]
  $region26: #{tpu_custom_call.1} parent=0
    _
  %s5 = ssub.s32 1, %s3
  %s6 = scalar_select 0, %s5, %s3
  $region1: #{tpu_custom_call.1} parent=0
    #allocation2 [shape = 'u8[53248]{0}', space=vmem, size = 0xd000, scoped, tag = 'input window, operand 0, single buffered']
    #allocation3 [shape = 's32[1]{0}', space=sflag, size = 0x4, scoped, tag = 'scoped memory for tpu_custom_call.1']
    #allocation4 [shape = 's32[1]{0}', space=sflag, size = 0x4, scoped, tag = 'scoped memory for tpu_custom_call.1']
    #allocation5 [shape = 'u8[53248]{0}', space=vmem, size = 0xd000, scoped, tag = 'input window, operand 1, single buffered']
    #allocation6 [shape = 's32[1]{0}', space=sflag, size = 0x4, scoped, tag = 'scoped memory for tpu_custom_call.1']
    #allocation7 [shape = 'u8[53248]{0}', space=vmem, size = 0xd000, scoped, tag = 'output window, operand 0, single buffered']
    %7 = vsyncpa [#allocation3], 0
    %8 = vsyncpa [#allocation6], 0
    %9 = vsyncpa [#allocation4], 0
    // Predicated region
    $region2: #{tpu_custom_call.1} parent=1 // pred_check
      _
    $region3: #{tpu_custom_call.1} parent=1 // pred_check_branch
      %11 = sbr.rel (0) target = $region5
    $region4: #{tpu_custom_call.1} parent=1 // pred_region
      %s13 = ssub.s32 1664, 1664
      %14 = vsyncadd [#allocation3], %s13
      %s15 = sshll.u32 [#allocation2], 4
      %s16 = int_to_ptr.vmem [resolvable:$true] %s15
      %21 = dma.hbm_to_vmem [thread:$0]  %s0, 1664, %s16, [#allocation3], 128, 128, 8
    $region5: #{tpu_custom_call.1} parent=1 // pred_fallthru
      _
    // Predicated region
    $region6: #{tpu_custom_call.1} parent=1 // pred_check
      _
    $region7: #{tpu_custom_call.1} parent=1 // pred_check_branch
      %23 = sbr.rel (0) target = $region9
    $region8: #{tpu_custom_call.1} parent=1 // pred_region
      %s25 = ssub.s32 1664, 1664
      %26 = vsyncadd [#allocation6], %s25
      %s27 = sshll.u32 [#allocation5], 4
      %s28 = int_to_ptr.vmem [resolvable:$true] %s27
      %33 = dma.hbm_to_vmem [thread:$0]  %s1, 1664, %s28, [#allocation6], 128, 128, 8
    $region9: #{tpu_custom_call.1} parent=1 // pred_fallthru
      _
    // Predicated region
    $region10: #{tpu_custom_call.1} parent=1 // pred_check
      _
    $region11: #{tpu_custom_call.1} parent=1 // pred_check_branch
      %35 = sbr.rel (0) target = $region13
    $region12: #{tpu_custom_call.1} parent=1 // pred_region
      %36 = dma.done [#allocation3], 1664
    $region13: #{tpu_custom_call.1} parent=1 // pred_fallthru
      _
    // Predicated region
    $region14: #{tpu_custom_call.1} parent=1 // pred_check
      _
    $region15: #{tpu_custom_call.1} parent=1 // pred_check_branch
      %38 = sbr.rel (0) target = $region17
    $region16: #{tpu_custom_call.1} parent=1 // pred_region
      %39 = dma.done [#allocation6], 1664
    $region17: #{tpu_custom_call.1} parent=1 // pred_fallthru
      _
    %v40 = vld [vmem:[#allocation2] sm:$0xff]
    %v41 = vld [vmem:[#allocation2 + $0x8] sm:$0xff]
    %v42 = vld [vmem:[#allocation2 + $0x10] sm:$0xff]
    %v43 = vld [vmem:[#allocation2 + $0x18] sm:$0xff]
    %v44 = vld [vmem:[#allocation2 + $0x20] sm:$0xff]
    %v45 = vld [vmem:[#allocation2 + $0x28] sm:$0xff]
    %v46 = vld [vmem:[#allocation2 + $0x30] sm:$0xff]
    %v47 = vld [vmem:[#allocation2 + $0x38] sm:$0xff]
    %v48 = vld [vmem:[#allocation2 + $0x40] sm:$0xff]
    %v49 = vld [vmem:[#allocation2 + $0x48] sm:$0xff]
    %v50 = vld [vmem:[#allocation2 + $0x50] sm:$0xff]
    %v51 = vld [vmem:[#allocation2 + $0x58] sm:$0xff]
    %v52 = vld [vmem:[#allocation2 + $0x60] sm:$0x3]
    %v53 = vld [vmem:[#allocation5] sm:$0xff]
    %v54 = vld [vmem:[#allocation5 + $0x8] sm:$0xff]
    %v55 = vld [vmem:[#allocation5 + $0x10] sm:$0xff]
    %v56 = vld [vmem:[#allocation5 + $0x18] sm:$0xff]
    %v57 = vld [vmem:[#allocation5 + $0x20] sm:$0xff]
    %v58 = vld [vmem:[#allocation5 + $0x28] sm:$0xff]
    %v59 = vld [vmem:[#allocation5 + $0x30] sm:$0xff]
    %v60 = vld [vmem:[#allocation5 + $0x38] sm:$0xff]
    %v61 = vld [vmem:[#allocation5 + $0x40] sm:$0xff]
    %v62 = vld [vmem:[#allocation5 + $0x48] sm:$0xff]
    %v63 = vld [vmem:[#allocation5 + $0x50] sm:$0xff]
    %v64 = vld [vmem:[#allocation5 + $0x58] sm:$0xff]
    %v65 = vld [vmem:[#allocation5 + $0x60] sm:$0x3]
    %v66 = vadd.f32 %v40, %v53
    %v67 = vadd.f32 %v41, %v54
    %v68 = vadd.f32 %v42, %v55
    %v69 = vadd.f32 %v43, %v56
    %v70 = vadd.f32 %v44, %v57
    %v71 = vadd.f32 %v45, %v58
    %v72 = vadd.f32 %v46, %v59
    %v73 = vadd.f32 %v47, %v60
    %v74 = vadd.f32 %v48, %v61
    %v75 = vadd.f32 %v49, %v62
    %v76 = vadd.f32 %v50, %v63
    %v77 = vadd.f32 %v51, %v64
    %v78 = vadd.f32 %v52, %v65
    %79 = vst [vmem:[#allocation7] sm:$0xff] %v66
    %80 = vst [vmem:[#allocation7 + $0x8] sm:$0xff] %v67
    %81 = vst [vmem:[#allocation7 + $0x10] sm:$0xff] %v68
    %82 = vst [vmem:[#allocation7 + $0x18] sm:$0xff] %v69
    %83 = vst [vmem:[#allocation7 + $0x20] sm:$0xff] %v70
    %84 = vst [vmem:[#allocation7 + $0x28] sm:$0xff] %v71
    %85 = vst [vmem:[#allocation7 + $0x30] sm:$0xff] %v72
    %86 = vst [vmem:[#allocation7 + $0x38] sm:$0xff] %v73
    %87 = vst [vmem:[#allocation7 + $0x40] sm:$0xff] %v74
    %88 = vst [vmem:[#allocation7 + $0x48] sm:$0xff] %v75
    %89 = vst [vmem:[#allocation7 + $0x50] sm:$0xff] %v76
    %90 = vst [vmem:[#allocation7 + $0x58] sm:$0xff] %v77
    %91 = vst [vmem:[#allocation7 + $0x60] sm:$0x3] %v78
    // Predicated region
    $region18: #{tpu_custom_call.1} parent=1 // pred_check
      _
    $region19: #{tpu_custom_call.1} parent=1 // pred_check_branch
      %93 = sbr.rel (0) target = $region21
    $region20: #{tpu_custom_call.1} parent=1 // pred_region
      %s95 = ssub.s32 1664, 1664
      %96 = vsyncadd [#allocation4], %s95
      %s97 = sshll.u32 [#allocation7], 4
      %s98 = int_to_ptr.vmem [resolvable:$true] %s97
      %103 = dma.vmem_to_hbm [thread:$0]  %s98, 1664, %s2, [#allocation4], 128, 128, 8
    $region21: #{tpu_custom_call.1} parent=1 // pred_fallthru
      _
    // Predicated region
    $region22: #{tpu_custom_call.1} parent=1 // pred_check
      _
    $region23: #{tpu_custom_call.1} parent=1 // pred_check_branch
      %105 = sbr.rel (0) target = $region25
    $region24: #{tpu_custom_call.1} parent=1 // pred_region
      %106 = dma.done [#allocation4], 1664
    $region25: #{tpu_custom_call.1} parent=1 // pred_fallthru
      _
    %107 = vsyncpa [#allocation3], 1
    %108 = vsyncpa [#allocation6], 1
    %109 = vsyncpa [#allocation4], 1

</llo_original>
